<compile_context>
chip_gen: v7x
topology: tpu7x:2x2x1
jax: 0.10.0
libtpu: 0.0.40
codegen_flags: <defaults>
</compile_context>

<pallas_src>
import jax
import jax.numpy as jnp
from jax.experimental import pallas as pl
from jax.experimental.pallas import tpu as pltpu


HIDDEN = 512  # hard-coded hidden width in the torch module


def _round_up(x, m):
    return ((x + m - 1) // m) * m


def _default_tile_width():
    """Column tile width: 2048 on v6e/v7x (hide per-step overhead), else 1024."""
    try:
        kind = jax.devices()[0].device_kind.lower()
    except Exception:
        return 1024
    if "v6" in kind or "v7" in kind:
        return 2048
    return 1024


# --------------------- first layer: tiny, runs once --------------------------
def _hidden_kernel(x_ref, w1_ref, b1_ref, h_ref):
    # h[head] = relu(x @ w1[head] + b1[head]); f32 accumulation on the MXU.
    h = jnp.dot(x_ref[...], w1_ref[0], preferred_element_type=jnp.float32)
    h_ref[0] = jnp.maximum(h + b1_ref[0], 0.0)


def hidden_activations(x, w1_all, b1_all):
    """relu(x @ w1 + b1) for all heads -> (n_heads, B, H) float32."""
    B, F = x.shape
    n_heads, _, H = w1_all.shape
    return pl.pallas_call(
        _hidden_kernel,
        out_shape=jax.ShapeDtypeStruct((n_heads, B, H), jnp.float32),
        grid=(n_heads,),
        in_specs=[
            pl.BlockSpec((B, F), lambda h: (0, 0)),          # x (resident)
            pl.BlockSpec((1, F, H), lambda h: (h, 0, 0)),    # w1 per head
            pl.BlockSpec((1, 1, H), lambda h: (h, 0, 0)),    # b1 per head
        ],
        out_specs=pl.BlockSpec((1, B, H), lambda h: (h, 0, 0)),
        compiler_params=pltpu.CompilerParams(
            dimension_semantics=("arbitrary",)),
    )(x, w1_all, b1_all)


# ------------- second layer: all heads fused, w2 streamed from HBM -----------
def _heads_out_kernel(head_ids_ref,        # SMEM (n_tiles,) int32  (prefetched)
                      h_ref,               # VMEM (n_heads, B, H) f32, resident
                      w2_ref,              # VMEM (1, H, tn) bf16 tile (streamed)
                      b2_ref,              # VMEM (1, 1, tn) f32 tile (streamed)
                      o_ref):              # VMEM (B, tn) f32 output tile
    hid = head_ids_ref[pl.program_id(0)]   # which head owns this column tile
    h = h_ref[hid]                                         # (B, H) f32
    w2 = w2_ref[0].astype(jnp.float32)                     # bf16 -> f32 (VPU, cheap)
    o = jnp.dot(h, w2, preferred_element_type=jnp.float32)
    o_ref[...] = o + b2_ref[0]


def fused_head_outputs(h_all, w2_tiles, b2_tiles, head_ids, *, tn):
    """All heads' h @ w2 + b2 in one streamed pallas_call.

    h_all:    (n_heads, B, H) float32 (resident in VMEM)
    w2_tiles: (n_tiles, H, tn) bfloat16 (each tile contiguous in HBM)
    b2_tiles: (n_tiles, 1, tn) float32
    head_ids: (n_tiles,) int32 head index owning each column tile.
    Returns (B, n_tiles * tn) float32.
    """
    n_heads, B, H = h_all.shape
    n_tiles = w2_tiles.shape[0]
    total_pad = n_tiles * tn

    cost = pl.CostEstimate(
        flops=2 * B * H * total_pad,
        transcendentals=0,
        bytes_accessed=(4 * n_heads * B * H      # h_all
                        + 2 * H * total_pad      # bf16 w2 stream (dominant)
                        + 4 * total_pad          # b2
                        + 4 * B * total_pad),    # output
    )

    return pl.pallas_call(
        _heads_out_kernel,
        out_shape=jax.ShapeDtypeStruct((B, total_pad), jnp.float32),
        grid_spec=pltpu.PrefetchScalarGridSpec(
            num_scalar_prefetch=1,
            grid=(n_tiles,),
            in_specs=[
                pl.BlockSpec((n_heads, B, H), lambda t, hids: (0, 0, 0)),  # h_all
                pl.BlockSpec((1, H, tn), lambda t, hids: (t, 0, 0)),       # w2 tile
                pl.BlockSpec((1, 1, tn), lambda t, hids: (t, 0, 0)),       # b2 tile
            ],
            out_specs=pl.BlockSpec((B, tn), lambda t, hids: (0, t)),
        ),
        compiler_params=pltpu.CompilerParams(
            dimension_semantics=("parallel",),      # megacore shards tiles on v7x
            vmem_limit_bytes=32 * 1024 * 1024,
        ),
        cost_estimate=cost,
    )(head_ids, h_all, w2_tiles, b2_tiles)


# --------------------------- module-level wrapper ----------------------------
class GaussianParameterPredictorPallas:
    """JAX/Pallas re-implementation of GaussianParameterPredictor.forward."""

    HIDDEN = HIDDEN
    HEAD_ORDER = ("xyz", "scaling", "rotation", "opacity",
                  "features_dc", "features_rest")

    def __init__(self, feature_dim=256, num_gaussians=1000, sh_degree=3,
                 key=None, tn=None):
        self.feature_dim = feature_dim
        self.num_gaussians = num_gaussians
        self.sh_degree = sh_degree
        self.xyz_dim = 3
        self.scaling_dim = 2
        self.rotation_dim = 4
        self.opacity_dim = 1
        self.features_dc_dim = 3
        self.features_rest_dim = 3 * ((sh_degree + 1) ** 2 - 1)

        if key is None:
            key = jax.random.PRNGKey(0)

        head_out_dims = {
            "xyz": num_gaussians * self.xyz_dim,
            "scaling": num_gaussians * self.scaling_dim,
            "rotation": num_gaussians * self.rotation_dim,
            "opacity": num_gaussians * self.opacity_dim,
            "features_dc": num_gaussians * self.features_dc_dim,
            "features_rest": num_gaussians * self.features_rest_dim,
        }

        # Deterministic nn.Linear-style init: U(-1/sqrt(fan_in), 1/sqrt(fan_in)).
        # Master weights stay float32 (exact module semantics); only the
        # kernel-side storage of w2 is cast to bf16 below.
        self.params = {}
        for name in self.HEAD_ORDER:
            out_dim = head_out_dims[name]
            key, k1, k2, k3, k4 = jax.random.split(key, 5)
            lim1 = 1.0 / jnp.sqrt(jnp.float32(feature_dim))
            lim2 = 1.0 / jnp.sqrt(jnp.float32(self.HIDDEN))
            self.params[name] = {
                "w1": jax.random.uniform(k1, (feature_dim, self.HIDDEN),
                                         jnp.float32, -lim1, lim1),
                "b1": jax.random.uniform(k2, (self.HIDDEN,),
                                         jnp.float32, -lim1, lim1),
                "w2": jax.random.uniform(k3, (self.HIDDEN, out_dim),
                                         jnp.float32, -lim2, lim2),
                "b2": jax.random.uniform(k4, (out_dim,),
                                         jnp.float32, -lim2, lim2),
            }

        # Effective column tile: lane-dense, generation-aware, but never wider
        # than the largest head needs.
        if tn is None:
            tn = _default_tile_width()
        max_out = max(head_out_dims.values())
        self._tn = max(128, min(tn, _round_up(max_out, 128)))

        # Pre-tile the second-layer weights/biases: pad each head's columns to
        # a multiple of tn, split into (H, tn) tiles, concatenate along the
        # tile axis.  Every tile is then a single contiguous HBM read.
        offsets = {}
        w2_tiles, b2_tiles, head_ids = [], [], []
        off = 0
        for idx, name in enumerate(self.HEAD_ORDER):
            d = head_out_dims[name]
            dpad = _round_up(d, self._tn)
            offsets[name] = (off, d)
            p = self.params[name]
            w2p = jnp.pad(p["w2"], ((0, 0), (0, dpad - d)))          # (H, dpad)
            b2p = jnp.pad(p["b2"], ((0, dpad - d),))                 # (dpad,)
            k = dpad // self._tn
            w2_tiles.append(jnp.transpose(
                w2p.reshape(self.HIDDEN, k, self._tn), (1, 0, 2)))   # (k, H, tn)
            b2_tiles.append(b2p.reshape(k, 1, self._tn))             # (k, 1, tn)
            head_ids += [idx] * k
            off += dpad

        self._offsets = offsets
        self._total_pad = off
        self._w1_all = jnp.stack([self.params[n]["w1"] for n in self.HEAD_ORDER])
        self._b1_all = jnp.stack(
            [self.params[n]["b1"].reshape(1, self.HIDDEN) for n in self.HEAD_ORDER])
        self._w2_tiles = jnp.concatenate(w2_tiles, axis=0).astype(jnp.bfloat16)
        self._b2_tiles = jnp.concatenate(b2_tiles, axis=0)           # f32, tiny
        self._head_ids = jnp.asarray(head_ids, jnp.int32)

    def __call__(self, features):
        B = features.shape[0]
        N = self.num_gaussians

        h_all = hidden_activations(features, self._w1_all, self._b1_all)
        out_all = fused_head_outputs(h_all, self._w2_tiles, self._b2_tiles,
                                     self._head_ids, tn=self._tn)

        def head(name):
            off, d = self._offsets[name]
            return out_all[:, off:off + d]

        xyz = head("xyz").reshape(B, N, self.xyz_dim)
        scaling = head("scaling").reshape(B, N, self.scaling_dim)
        rotation = head("rotation").reshape(B, N, self.rotation_dim)
        opacity = head("opacity").reshape(B, N, self.opacity_dim)

        # view(B, N, 1, 3).transpose(2, 3) -> (B, N, 3, 1)
        features_dc = head("features_dc").reshape(B, N, 1, self.features_dc_dim)
        features_dc = jnp.swapaxes(features_dc, 2, 3)

        # view(B, N, rest//3, 3).transpose(2, 3) -> (B, N, 3, rest//3)
        features_rest = head("features_rest").reshape(
            B, N, self.features_rest_dim // 3, 3)
        features_rest = jnp.swapaxes(features_rest, 2, 3)

        return {
            "xyz": xyz,
            "scaling": scaling,
            "rotation": rotation,
            "opacity": opacity,
            "features_dc": features_dc,
            "features_rest": features_rest,
        }


# ------------------------------ reference check ------------------------------
def _head_ref_f32(x, p):
    h = jnp.maximum(x @ p["w1"] + p["b1"], 0.0)
    return h @ p["w2"] + p["b2"]


def _head_ref_matched(x, p):
    # Matches the kernel's numerics: bf16-rounded w2, f32 accumulation.
    h = jnp.maximum(x @ p["w1"] + p["b1"], 0.0)
    w2 = p["w2"].astype(jnp.bfloat16).astype(jnp.float32)
    return h @ w2 + p["b2"]


if __name__ == "__main__":
    # Small shapes consistent with the module.
    B, FEAT, NG, SH = 2, 32, 8, 3

    key = jax.random.PRNGKey(0)
    key, xk = jax.random.split(key)
    features = jax.random.normal(xk, (B, FEAT), jnp.float32)

    model = GaussianParameterPredictorPallas(
        feature_dim=FEAT, num_gaussians=NG, sh_degree=SH, key=key)

    out = model(features)
    out = jax.tree_util.tree_map(jax.block_until_ready, out)

    # Shape checks (match the torch module's forward).
    rest_per_channel = (SH + 1) ** 2 - 1  # 15
    assert out["xyz"].shape == (B, NG, 3)
    assert out["scaling"].shape == (B, NG, 2)
    assert out["rotation"].shape == (B, NG, 4)
    assert out["opacity"].shape == (B, NG, 1)
    assert out["features_dc"].shape == (B, NG, 3, 1)
    assert out["features_rest"].shape == (B, NG, 3, rest_per_channel)

    # Numerical check of every fused head against pure-JAX references.
    flat = {
        "xyz": out["xyz"].reshape(B, -1),
        "scaling": out["scaling"].reshape(B, -1),
        "rotation": out["rotation"].reshape(B, -1),
        "opacity": out["opacity"].reshape(B, -1),
        "features_dc": jnp.swapaxes(out["features_dc"], 2, 3).reshape(B, -1),
        "features_rest": jnp.swapaxes(out["features_rest"], 2, 3).reshape(B, -1),
    }
    for name in model.HEAD_ORDER:
        ref_m = _head_ref_matched(features, model.params[name])
        assert jnp.allclose(flat[name], ref_m, atol=2e-3, rtol=2e-3), name
        ref_f = _head_ref_f32(features, model.params[name])
        assert jnp.allclose(flat[name], ref_f, atol=2e-2, rtol=2e-2), name

    print("KERNEL_OK")
</pallas_src>

<mosaic_0001>
module attributes {stable_mosaic.version = 11 : i64} {
  func.func @_hidden_kernel(%arg0: i32, %arg1: memref<2x32xf32, #tpu.memory_space<vmem>>, %arg2: memref<1x32x512xf32, #tpu.memory_space<vmem>>, %arg3: memref<1x1x512xf32, #tpu.memory_space<vmem>>, %arg4: memref<1x2x512xf32, #tpu.memory_space<vmem>>) attributes {dimension_semantics = [#tpu.dimension_semantics<arbitrary>], iteration_bounds = array<i64: 6>, scalar_prefetch = 0 : i64, scratch_operands = 0 : i64, tpu.core_type = #tpu.core_type<tc>, window_params = [{pipeline_mode = #tpu.pipeline_mode<synchronous>, transform_indices = @transform_0, window_bounds = array<i64: 2, 32>}, {transform_indices = @transform_1, window_bounds = array<i64: 1, 32, 512>}, {transform_indices = @transform_2, window_bounds = array<i64: 1, 1, 512>}, {transform_indices = @transform_3, window_bounds = array<i64: 1, 2, 512>}]} {
    %c0 = arith.constant 0 : index
    %c0_0 = arith.constant 0 : index
    %0 = vector.load %arg1[%c0, %c0_0] : memref<2x32xf32, #tpu.memory_space<vmem>>, vector<2x32xf32>
    %c0_1 = arith.constant 0 : index
    %c0_2 = arith.constant 0 : index
    %c0_3 = arith.constant 0 : index
    %1 = vector.load %arg2[%c0_1, %c0_2, %c0_3] : memref<1x32x512xf32, #tpu.memory_space<vmem>>, vector<1x32x512xf32>
    %2 = vector.shape_cast %1 : vector<1x32x512xf32> to vector<32x512xf32>
    %cst = arith.constant dense<0.000000e+00> : vector<2x512xf32>
    %3 = tpu.matmul %0, %2, %cst {dimension_numbers = #tpu.dot_dimension_numbers<[1], [0], [0], [1], [0, 0, 1, 1], [], []>} : vector<2x32xf32>, vector<32x512xf32>, vector<2x512xf32> -> vector<2x512xf32>
    %c0_4 = arith.constant 0 : index
    %c0_5 = arith.constant 0 : index
    %c0_6 = arith.constant 0 : index
    %4 = vector.load %arg3[%c0_4, %c0_5, %c0_6] : memref<1x1x512xf32, #tpu.memory_space<vmem>>, vector<1x1x512xf32>
    %5 = vector.shape_cast %4 : vector<1x1x512xf32> to vector<1x512xf32>
    %6 = vector.broadcast %5 : vector<1x512xf32> to vector<2x512xf32>
    %7 = arith.addf %3, %6 : vector<2x512xf32>
    %cst_7 = arith.constant 0.000000e+00 : f32
    %8 = vector.broadcast %cst_7 : f32 to vector<2x512xf32>
    %9 = arith.maximumf %7, %8 : vector<2x512xf32>
    %c0_8 = arith.constant 0 : index
    %c0_9 = arith.constant 0 : index
    %c0_10 = arith.constant 0 : index
    %10 = vector.load %arg4[%c0_8, %c0_9, %c0_10] : memref<1x2x512xf32, #tpu.memory_space<vmem>>, vector<1x2x512xf32>
    %11 = vector.shape_cast %10 : vector<1x2x512xf32> to vector<2x512xf32>
    %12 = vector.shape_cast %9 : vector<2x512xf32> to vector<1x2x512xf32>
    tpu.vector_store %arg4[%c0_8, %c0_9, %c0_10], %12 {strides = array<i32>} : memref<1x2x512xf32, #tpu.memory_space<vmem>>, vector<1x2x512xf32>,
    return
  }
  func.func @transform_0(%arg0: i32) -> (i32, i32) {
    %c0_i32 = arith.constant 0 : i32
    %c0_i32_0 = arith.constant 0 : i32
    %c0_i32_1 = arith.constant 0 : i32
    return %c0_i32, %c0_i32_0 : i32, i32
  }
  func.func @transform_1(%arg0: i32) -> (i32, i32, i32) {
    %c0_i32 = arith.constant 0 : i32
    %c0_i32_0 = arith.constant 0 : i32
    %c0_i32_1 = arith.constant 0 : i32
    return %arg0, %c0_i32, %c0_i32_0 : i32, i32, i32
  }
  func.func @transform_2(%arg0: i32) -> (i32, i32, i32) {
    %c0_i32 = arith.constant 0 : i32
    %c0_i32_0 = arith.constant 0 : i32
    %c0_i32_1 = arith.constant 0 : i32
    return %arg0, %c0_i32, %c0_i32_0 : i32, i32, i32
  }
  func.func @transform_3(%arg0: i32) -> (i32, i32, i32) {
    %c0_i32 = arith.constant 0 : i32
    %c0_i32_0 = arith.constant 0 : i32
    %c0_i32_1 = arith.constant 0 : i32
    return %arg0, %c0_i32, %c0_i32_0 : i32, i32, i32
  }
}

</mosaic_0001>

<llo_original>
// kernel: tpu_custom_call.1
$region0: #{tpu_custom_call.1}
  #allocation0 [shape = 'u32[]', space=smem, size = 0x4, offset = 0x4, fixed_abs, tag = 'smem constant byte address 0x4 - core index']
  #allocation1 [shape = 'u32[144,128]{1,0:T(1,128)}', space=vmem, size = 0x12000, scoped, tag = 'internal scratch']
  %s0 = inlined_call_operand.hbm [shape: f32[2,32], index: 0, kind: input, shape index: {}]
  %s1 = inlined_call_operand.hbm [shape: f32[6,32,512], index: 1, kind: input, shape index: {}]
  %s2 = inlined_call_operand.hbm [shape: f32[6,1,512], index: 2, kind: input, shape index: {}]
  %s3 = inlined_call_operand.hbm [shape: f32[6,2,512], index: 3, kind: output, shape index: {}]
  %s4 = sld [smem:[#allocation0]]
  $region57: #{tpu_custom_call.1} parent=0
    _
  %s6 = ssub.s32 1, %s4
  %s7 = scalar_select 0, %s6, %s4
  $region1: #{tpu_custom_call.1} parent=0
    #allocation2 [shape = 'u8[1024]{0}', space=vmem, size = 0x400, scoped, tag = 'input window, operand 0, single buffered']
    #allocation3 [shape = 's32[2]{0}', space=sflag, size = 0x8, scoped, tag = 'scoped memory for tpu_custom_call.1']
    #allocation4 [shape = 's32[2]{0}', space=sflag, size = 0x8, scoped, tag = 'scoped memory for tpu_custom_call.1']
    #allocation5 [shape = 'u8[131072]{0}', space=vmem, size = 0x20000, scoped, tag = 'input window, operand 1']
    #allocation6 [shape = 's32[2]{0}', space=sflag, size = 0x8, scoped, tag = 'scoped memory for tpu_custom_call.1']
    #allocation7 [shape = 'u8[4096]{0}', space=vmem, size = 0x1000, scoped, tag = 'input window, operand 2']
    #allocation8 [shape = 'u8[8192]{0}', space=vmem, size = 0x2000, scoped, tag = 'output window, operand 0']
    %8 = vsyncpa [#allocation3], 0
    %9 = vsyncpa [#allocation6], 0
    %s10 = scalar_lea.sflag [#allocation6], 1
    %11 = vsyncpa %s10, 0
    %12 = vsyncpa [#allocation4], 0
    %s13 = scalar_lea.sflag [#allocation4], 1
    %14 = vsyncpa %s13, 0
    loop: start=0, step=1, limit=8
    $region2: #{tpu_custom_call.1} parent=1 // loop_pre_header
      _
    $region3: #{tpu_custom_call.1} parent=1 // loop_header
      %s16 = sphi 0, %s20
      %p17 = scmp.ge.s32.totalorder %s16, 8
      %s24 = sphi 0, %s24
      %s26 = sphi 0, %s24
      %s27 = sphi 0, %s26
      %s41 = sphi 0, %s27
      %s47 = sphi 0, %s49
      %s50 = sphi 0, %s47
      %s51 = sphi 0, %s50
      %s67 = sphi 0, %s51
      %s73 = sphi 0, %s75
      %s76 = sphi 0, %s73
      %s77 = sphi 0, %s76
      %s93 = sphi 0, %s77
      %s99 = sphi 0, %s101
      %s102 = sphi 0, %s99
      %s103 = sphi 0, %s102
      %s119 = sphi 0, %s103
    $region4: #{tpu_custom_call.1} parent=1 // loop_header_branch
      %19 = sbr.rel (%p17) target = $region8
    $region5: #{tpu_custom_call.1} parent=1 // loop_body
      %s21 = ssub.s32 %s16, 1
      %s22 = ssub.s32 %s16, 2
      %s23 = sadd.s32 %s16, 1
      %s25 = sadd.s32 %s24, 1
      %p28 = scmp.eq.s32.totalorder %s16, 5
      %p29 = scmp.ne.s32.totalorder %s24, %s26
      %p30 = scmp.eq.s32.totalorder %s16, 0
      %p31 = por %p29, %p30
      %p32 = scmp.ne.s32.totalorder %s24, %s26
      %p33 = scmp.eq.s32.totalorder %s21, 5
      %p34 = por %p32, %p33
      %p35 = scmp.ne.s32.totalorder %s26, %s27
      %p36 = scmp.eq.s32.totalorder %s21, 0
      %p37 = por %p35, %p36
      %p38 = scmp.ne.s32.totalorder %s26, %s27
      %p39 = scmp.eq.s32.totalorder %s22, 5
      %p40 = por %p38, %p39
      %p42 = scmp.ne.s32.totalorder %s27, %s41
      %p43 = scmp.eq.s32.totalorder %s22, 0
      %p44 = por %p42, %p43
      %s45 = ssub.s32 %s16, %s23
      %p46 = scmp.eq.s32.totalorder %s45, 0
      %s48 = sadd.s32 %s47, 1
      %s49 = scalar_select %p46, %s47, %s48
      %p52 = pneg %p46
      %p53 = scmp.eq.s32.totalorder %s16, 5
      %p54 = por %p52, %p53
      %p55 = scmp.ne.s32.totalorder %s47, %s50
      %p56 = scmp.eq.s32.totalorder %s16, 0
      %p57 = por %p55, %p56
      %p58 = scmp.ne.s32.totalorder %s47, %s50
      %p59 = scmp.eq.s32.totalorder %s21, 5
      %p60 = por %p58, %p59
      %p61 = scmp.ne.s32.totalorder %s50, %s51
      %p62 = scmp.eq.s32.totalorder %s21, 0
      %p63 = por %p61, %p62
      %p64 = scmp.ne.s32.totalorder %s50, %s51
      %p65 = scmp.eq.s32.totalorder %s22, 5
      %p66 = por %p64, %p65
      %p68 = scmp.ne.s32.totalorder %s51, %s67
      %p69 = scmp.eq.s32.totalorder %s22, 0
      %p70 = por %p68, %p69
      %s71 = ssub.s32 %s16, %s23
      %p72 = scmp.eq.s32.totalorder %s71, 0
      %s74 = sadd.s32 %s73, 1
      %s75 = scalar_select %p72, %s73, %s74
      %p78 = pneg %p72
      %p79 = scmp.eq.s32.totalorder %s16, 5
      %p80 = por %p78, %p79
      %p81 = scmp.ne.s32.totalorder %s73, %s76
      %p82 = scmp.eq.s32.totalorder %s16, 0
      %p83 = por %p81, %p82
      %p84 = scmp.ne.s32.totalorder %s73, %s76
      %p85 = scmp.eq.s32.totalorder %s21, 5
      %p86 = por %p84, %p85
      %p87 = scmp.ne.s32.totalorder %s76, %s77
      %p88 = scmp.eq.s32.totalorder %s21, 0
      %p89 = por %p87, %p88
      %p90 = scmp.ne.s32.totalorder %s76, %s77
      %p91 = scmp.eq.s32.totalorder %s22, 5
      %p92 = por %p90, %p91
      %p94 = scmp.ne.s32.totalorder %s77, %s93
      %p95 = scmp.eq.s32.totalorder %s22, 0
      %p96 = por %p94, %p95
      %s97 = ssub.s32 %s16, %s23
      %p98 = scmp.eq.s32.totalorder %s97, 0
      %s100 = sadd.s32 %s99, 1
      %s101 = scalar_select %p98, %s99, %s100
      %p104 = pneg %p98
      %p105 = scmp.eq.s32.totalorder %s16, 5
      %p106 = por %p104, %p105
      %p107 = scmp.ne.s32.totalorder %s99, %s102
      %p108 = scmp.eq.s32.totalorder %s16, 0
      %p109 = por %p107, %p108
      %p110 = scmp.ne.s32.totalorder %s99, %s102
      %p111 = scmp.eq.s32.totalorder %s21, 5
      %p112 = por %p110, %p111
      %p113 = scmp.ne.s32.totalorder %s102, %s103
      %p114 = scmp.eq.s32.totalorder %s21, 0
      %p115 = por %p113, %p114
      %p116 = scmp.ne.s32.totalorder %s102, %s103
      %p117 = scmp.eq.s32.totalorder %s22, 5
      %p118 = por %p116, %p117
      %p120 = scmp.ne.s32.totalorder %s103, %s119
      %p121 = scmp.eq.s32.totalorder %s22, 0
      %p122 = por %p120, %p121
      %p123 = scmp.le.s32.totalorder 1, %s16
      %p124 = scmp.lt.s32.totalorder %s16, 7
      %p125 = pnand %p123, %p124
      %p126 = pneg %p125
      // Predicated region
      $region9: #{tpu_custom_call.1} parent=5 // pred_check
        _
      $region10: #{tpu_custom_call.1} parent=5 // pred_check_branch
        %128 = sbr.rel (%p125) target = $region12
      $region11: #{tpu_custom_call.1} parent=5 // pred_region
        %s129 = ssub.s32 %s16, 1
        // Predicated region
        $region13: #{tpu_custom_call.1} parent=11 // pred_check
          %p130 = pneg %p37
        $region14: #{tpu_custom_call.1} parent=11 // pred_check_branch
          %132 = sbr.rel (%p130) target = $region16
        $region15: #{tpu_custom_call.1} parent=11 // pred_region
          %s134 = ssub.s32 32, 32
          %135 = vsyncadd [#allocation3], %s134
          %s137 = sshll.u32 [#allocation2], 4
          %s138 = int_to_ptr.vmem [resolvable:$true] %s137
          %140 = dma.hbm_to_vmem [thread:$0]  %s0, 32, %s138, [#allocation3]
        $region16: #{tpu_custom_call.1} parent=11 // pred_fallthru
          _
      $region12: #{tpu_custom_call.1} parent=5 // pred_fallthru
        _
      %p141 = scmp.lt.s32.totalorder %s16, 6
      // Predicated region
      $region17: #{tpu_custom_call.1} parent=5 // pred_check
        %p142 = pneg %p141
      $region18: #{tpu_custom_call.1} parent=5 // pred_check_branch
        %144 = sbr.rel (%p142) target = $region20
      $region19: #{tpu_custom_call.1} parent=5 // pred_region
        // Predicated region
        $region21: #{tpu_custom_call.1} parent=19 // pred_check
          %p145 = pneg %p57
        $region22: #{tpu_custom_call.1} parent=19 // pred_check_branch
          %147 = sbr.rel (%p145) target = $region24
        $region23: #{tpu_custom_call.1} parent=19 // pred_region
          %s148 = sand.u32 %s16, 1
          %s149 = scalar_lea.sflag [#allocation6], %s148
          %s150 = sand.u32 %s47, 1
          %s151 = smul.addr %s150, 128
          %s152 = scalar_lea.vmem [#allocation5], %s151
          %s154 = ssub.s32 2048, 2048
          %155 = vsyncadd %s149, %s154
          %s156 = smul.addr %s16, 16
          %s157 = smul.addr %s156, 128
          %s158 = scalar_lea.hbm %s1, %s157
          %s159 = sshll.u32 %s152, 4
          %s160 = int_to_ptr.vmem [resolvable:$true] %s159
          %165 = dma.hbm_to_vmem [thread:$0]  %s158, 2048, %s160, %s149, 512, 512, 32
        $region24: #{tpu_custom_call.1} parent=19 // pred_fallthru
          _
        // Predicated region
        $region25: #{tpu_custom_call.1} parent=19 // pred_check
          %p166 = pneg %p83
        $region26: #{tpu_custom_call.1} parent=19 // pred_check_branch
          %168 = sbr.rel (%p166) target = $region28
        $region27: #{tpu_custom_call.1} parent=19 // pred_region
          %s169 = sand.u32 %s16, 1
          %s170 = scalar_lea.sflag [#allocation6], %s169
          %s171 = sand.u32 %s73, 1
          %s172 = smul.addr %s171, 4
          %s173 = scalar_lea.vmem [#allocation7], %s172
          %s175 = ssub.s32 64, 64
          %176 = vsyncadd %s170, %s175
          %s177 = smul.addr %s16, 4
          %s178 = smul.addr %s177, 16
          %s179 = scalar_lea.hbm %s2, %s178
          %s181 = sshll.u32 %s173, 4
          %s182 = int_to_ptr.vmem [resolvable:$true] %s181
          %184 = dma.hbm_to_vmem [thread:$0]  %s179, 64, %s182, %s170
        $region28: #{tpu_custom_call.1} parent=19 // pred_fallthru
          _
      $region20: #{tpu_custom_call.1} parent=5 // pred_fallthru
        _
      %p185 = scmp.le.s32.totalorder 1, %s16
      %p186 = scmp.lt.s32.totalorder %s16, 7
      %p187 = pnand %p185, %p186
      %p188 = pneg %p187
      // Predicated region
      $region29: #{tpu_custom_call.1} parent=5 // pred_check
        _
      $region30: #{tpu_custom_call.1} parent=5 // pred_check_branch
        %190 = sbr.rel (%p187) target = $region32
      $region31: #{tpu_custom_call.1} parent=5 // pred_region
        %s191 = ssub.s32 %s16, 1
        // Predicated region
        $region33: #{tpu_custom_call.1} parent=31 // pred_check
          %p192 = pneg %p37
        $region34: #{tpu_custom_call.1} parent=31 // pred_check_branch
          %194 = sbr.rel (%p192) target = $region36
        $region35: #{tpu_custom_call.1} parent=31 // pred_region
          %195 = dma.done [#allocation3], 32
        $region36: #{tpu_custom_call.1} parent=31 // pred_fallthru
          _
        %s196 = sand.u32 %s21, 1
        %s197 = scalar_lea.sflag [#allocation6], %s196
        %s198 = sand.u32 %s50, 1
        %s199 = smul.addr %s198, 128
        %s200 = scalar_lea.vmem [#allocation5], %s199
        // Predicated region
        $region37: #{tpu_custom_call.1} parent=31 // pred_check
          %p201 = pneg %p63
        $region38: #{tpu_custom_call.1} parent=31 // pred_check_branch
          %203 = sbr.rel (%p201) target = $region40
        $region39: #{tpu_custom_call.1} parent=31 // pred_region
          %204 = dma.done %s197, 2048
        $region40: #{tpu_custom_call.1} parent=31 // pred_fallthru
          _
        %s205 = sand.u32 %s21, 1
        %s206 = scalar_lea.sflag [#allocation6], %s205
        %s207 = sand.u32 %s76, 1
        %s208 = smul.addr %s207, 4
        %s209 = scalar_lea.vmem [#allocation7], %s208
        // Predicated region
        $region41: #{tpu_custom_call.1} parent=31 // pred_check
          %p210 = pneg %p89
        $region42: #{tpu_custom_call.1} parent=31 // pred_check_branch
          %212 = sbr.rel (%p210) target = $region44
        $region43: #{tpu_custom_call.1} parent=31 // pred_region
          %213 = dma.done %s206, 64
        $region44: #{tpu_custom_call.1} parent=31 // pred_fallthru
          _
        %p214 = pneg %p37
        %p215 = pneg %p34
        %s216 = sand.u32 %s21, 1
        %s217 = scalar_lea.sflag [#allocation6], %s216
        %s218 = sand.u32 %s50, 1
        %s219 = smul.addr %s218, 128
        %s220 = scalar_lea.vmem [#allocation5], %s219
        %p221 = pneg %p63
        %p222 = pneg %p60
        %s223 = sand.u32 %s21, 1
        %s224 = scalar_lea.sflag [#allocation6], %s223
        %s225 = sand.u32 %s76, 1
        %s226 = smul.addr %s225, 4
        %s227 = scalar_lea.vmem [#allocation7], %s226
        %p228 = pneg %p89
        %p229 = pneg %p86
        %p230 = pneg %p115
        %p231 = pneg %p112
        %s232 = sand.u32 %s102, 1
        %s233 = scalar_lea.sflag [#allocation4], %s232
        %s234 = sand.u32 %s102, 1
        %s235 = smul.addr %s234, 8
        %s236 = scalar_lea.vmem [#allocation8], %s235
        %v237 = vld [vmem:[#allocation2] sm:$0x3]
        %v238 = vld [vmem:[%s200] sm:$0xff]
        %v239 = vld [vmem:[%s200 + $0x8] sm:$0xff]
        %v240 = vld [vmem:[%s200 + $0x10] sm:$0xff]
        %v241 = vld [vmem:[%s200 + $0x18] sm:$0xff]
        %v242 = vld [vmem:[%s200 + $0x20] sm:$0xff]
        %v243 = vld [vmem:[%s200 + $0x28] sm:$0xff]
        %v244 = vld [vmem:[%s200 + $0x30] sm:$0xff]
        %v245 = vld [vmem:[%s200 + $0x38] sm:$0xff]
        %v246 = vld [vmem:[%s200 + $0x40] sm:$0xff]
        %v247 = vld [vmem:[%s200 + $0x48] sm:$0xff]
        %v248 = vld [vmem:[%s200 + $0x50] sm:$0xff]
        %v249 = vld [vmem:[%s200 + $0x58] sm:$0xff]
        %v250 = vld [vmem:[%s200 + $0x60] sm:$0xff]
        %v251 = vld [vmem:[%s200 + $0x68] sm:$0xff]
        %v252 = vld [vmem:[%s200 + $0x70] sm:$0xff]
        %v253 = vld [vmem:[%s200 + $0x78] sm:$0xff]
        %v254 = vld [vmem:[%s209] sm:$0xf]
        %v256 = vlaneseq
        %v257 = vshrl.u32 %v256, 7
        %v258 = vsub.s32 0, %v257
        %v259 = vrot.slane %v254, %v258
        %v260 = vlaneseq
        %v261 = vshrl.u32 %v260, 7
        %v262 = vsub.s32 1, %v261
        %v263 = vrot.slane %v254, %v262
        %v264 = vlaneseq
        %v265 = vshrl.u32 %v264, 7
        %v266 = vsub.s32 2, %v265
        %v267 = vrot.slane %v254, %v266
        %v268 = vlaneseq
        %v269 = vshrl.u32 %v268, 7
        %v270 = vsub.s32 3, %v269
        %v271 = vrot.slane %v254, %v270
        %vm276 = vcmask 261120
        %v278 = vsel %vm276, %v237, 0
        %280 = vmatprep.subr.mxu0 %v239
        %281 = vmatpush1.msra.mxu0 %v238
        %282 = vmatprep.subr.mxu0 %v243
        %283 = vmatpush1.msra.mxu0 %v242
        %284 = vmatprep.subr.mxu0 %v247
        %285 = vmatpush1.msra.mxu0 %v246
        %286 = vmatprep.subr.mxu0 %v251
        %287 = vmatpush1.msra.mxu0 %v250
        %288 = vmatprep.subr.mxu0 0.0
        %289 = vmatpush1.msra.mxu0 0.0
        %290 = vmatprep.subr.mxu0 0.0
        %291 = vmatpush1.msra.mxu0 0.0
        %292 = vmatprep.subr.mxu0 0.0
        %293 = vmatpush1.msra.mxu0 0.0
        %294 = vmatprep.subr.mxu0 0.0
        %295 = vmatpush1.msra.mxu0 0.0
        %296 = vmatprep.subr.mxu0 0.0
        %297 = vmatpush1.msra.mxu0 0.0
        %298 = vmatprep.subr.mxu0 0.0
        %299 = vmatpush1.msra.mxu0 0.0
        %300 = vmatprep.subr.mxu0 0.0
        %301 = vmatpush1.msra.mxu0 0.0
        %302 = vmatprep.subr.mxu0 0.0
        %303 = vmatpush1.msra.mxu0 0.0
        %304 = vmatprep.subr.mxu0 0.0
        %305 = vmatpush1.msra.mxu0 0.0
        %306 = vmatprep.subr.mxu0 0.0
        %307 = vmatpush1.msra.mxu0 0.0
        %308 = vmatprep.subr.mxu0 0.0
        %309 = vmatpush1.msra.mxu0 0.0
        %310 = vmatprep.subr.mxu0 0.0
        %311 = vmatpush1.msra.mxu0 0.0
        %312 = vmatprep.subr.mxu0 0.0
        %313 = vmatpush1.msra.mxu0 0.0
        %314 = vmatprep.subr.mxu0 0.0
        %315 = vmatpush1.msra.mxu0 0.0
        %316 = vmatprep.subr.mxu0 0.0
        %317 = vmatpush1.msra.mxu0 0.0
        %318 = vmatprep.subr.mxu0 0.0
        %319 = vmatpush1.msra.mxu0 0.0
        %320 = vmatprep.subr.mxu0 0.0
        %321 = vmatpush1.msra.mxu0 0.0
        %322 = vmatprep.subr.mxu0 0.0
        %323 = vmatpush1.msra.mxu0 0.0
        %324 = vmatprep.subr.mxu0 0.0
        %325 = vmatpush1.msra.mxu0 0.0
        %326 = vmatprep.subr.mxu0 0.0
        %327 = vmatpush1.msra.mxu0 0.0
        %328 = vmatprep.subr.mxu0 0.0
        %329 = vmatpush1.msra.mxu0 0.0
        %330 = vmatprep.subr.mxu0 0.0
        %331 = vmatpush1.msra.mxu0 0.0
        %332 = vmatprep.subr.mxu0 0.0
        %333 = vmatpush1.msra.mxu0 0.0
        %334 = vmatprep.subr.mxu0 0.0
        %335 = vmatpush1.msra.mxu0 0.0
        %336 = vmatprep.subr.mxu0 0.0
        %337 = vmatpush1.msra.mxu0 0.0
        %338 = vmatprep.subr.mxu0 0.0
        %339 = vmatpush1.msra.mxu0 0.0
        %340 = vmatprep.subr.mxu0 0.0
        %341 = vmatpush1.msra.mxu0 0.0
        %342 = vmatprep.subr.mxu0 0.0
        %343 = vmatpush1.msra.mxu0 0.0
        %344 = vmatprep.mubr.f32.mxu0 0.0
        %345 = vmatmul.mubr.f32.gmra.mrb[0].mxu0 %v278
        %v346 = vpop.f32.mrb[0].mxu0
        %v347 = vadd.f32 %v259, %v346
        %v348 = vpop.f32.mrb[0].mxu0
        %v349 = vadd.f32 %v263, %v348
        %350 = vdwg.mxu0
        %351 = vmatprep.subr.mxu0 %v241
        %352 = vmatpush1.msra.mxu0 %v240
        %353 = vmatprep.subr.mxu0 %v245
        %354 = vmatpush1.msra.mxu0 %v244
        %355 = vmatprep.subr.mxu0 %v249
        %356 = vmatpush1.msra.mxu0 %v248
        %357 = vmatprep.subr.mxu0 %v253
        %358 = vmatpush1.msra.mxu0 %v252
        %359 = vmatprep.subr.mxu0 0.0
        %360 = vmatpush1.msra.mxu0 0.0
        %361 = vmatprep.subr.mxu0 0.0
        %362 = vmatpush1.msra.mxu0 0.0
        %363 = vmatprep.subr.mxu0 0.0
        %364 = vmatpush1.msra.mxu0 0.0
        %365 = vmatprep.subr.mxu0 0.0
        %366 = vmatpush1.msra.mxu0 0.0
        %367 = vmatprep.subr.mxu0 0.0
        %368 = vmatpush1.msra.mxu0 0.0
        %369 = vmatprep.subr.mxu0 0.0
        %370 = vmatpush1.msra.mxu0 0.0
        %371 = vmatprep.subr.mxu0 0.0
        %372 = vmatpush1.msra.mxu0 0.0
        %373 = vmatprep.subr.mxu0 0.0
        %374 = vmatpush1.msra.mxu0 0.0
        %375 = vmatprep.subr.mxu0 0.0
        %376 = vmatpush1.msra.mxu0 0.0
        %377 = vmatprep.subr.mxu0 0.0
        %378 = vmatpush1.msra.mxu0 0.0
        %379 = vmatprep.subr.mxu0 0.0
        %380 = vmatpush1.msra.mxu0 0.0
        %381 = vmatprep.subr.mxu0 0.0
        %382 = vmatpush1.msra.mxu0 0.0
        %383 = vmatprep.subr.mxu0 0.0
        %384 = vmatpush1.msra.mxu0 0.0
        %385 = vmatprep.subr.mxu0 0.0
        %386 = vmatpush1.msra.mxu0 0.0
        %387 = vmatprep.subr.mxu0 0.0
        %388 = vmatpush1.msra.mxu0 0.0
        %389 = vmatprep.subr.mxu0 0.0
        %390 = vmatpush1.msra.mxu0 0.0
        %391 = vmatprep.subr.mxu0 0.0
        %392 = vmatpush1.msra.mxu0 0.0
        %393 = vmatprep.subr.mxu0 0.0
        %394 = vmatpush1.msra.mxu0 0.0
        %395 = vmatprep.subr.mxu0 0.0
        %396 = vmatpush1.msra.mxu0 0.0
        %397 = vmatprep.subr.mxu0 0.0
        %398 = vmatpush1.msra.mxu0 0.0
        %399 = vmatprep.subr.mxu0 0.0
        %400 = vmatpush1.msra.mxu0 0.0
        %401 = vmatprep.subr.mxu0 0.0
        %402 = vmatpush1.msra.mxu0 0.0
        %403 = vmatprep.subr.mxu0 0.0
        %404 = vmatpush1.msra.mxu0 0.0
        %405 = vmatprep.subr.mxu0 0.0
        %406 = vmatpush1.msra.mxu0 0.0
        %407 = vmatprep.subr.mxu0 0.0
        %408 = vmatpush1.msra.mxu0 0.0
        %409 = vmatprep.subr.mxu0 0.0
        %410 = vmatpush1.msra.mxu0 0.0
        %411 = vmatprep.subr.mxu0 0.0
        %412 = vmatpush1.msra.mxu0 0.0
        %413 = vmatprep.subr.mxu0 0.0
        %414 = vmatpush1.msra.mxu0 0.0
        %415 = vmatprep.mubr.f32.mxu0 0.0
        %416 = vmatmul.mubr.f32.gmra.mrb[0].mxu0 %v278
        %v417 = vpop.f32.mrb[0].mxu0
        %v418 = vadd.f32 %v267, %v417
        %v419 = vpop.f32.mrb[0].mxu0
        %v420 = vadd.f32 %v271, %v419
        %421 = vdwg.mxu0
        %v422 = vmax.f32 %v347, 0.0
        %v423 = vmax.f32 %v349, 0.0
        %v424 = vmax.f32 %v418, 0.0
        %v425 = vmax.f32 %v420, 0.0
        %v430 = vcombine.low %v422, %v423
        %v431 = vcombine.low %v424, %v425
        %v433 = vunpack.c.l.s4 1983009808
        %v434 = vunpack.c.0.s8 %v433
        %v435 = vlaneseq
        %v436 = vshrl.u32 %v435, 7
        %v437 = vsub.s32 %v434, %v436
        %v438 = vrot.slane %v430, %v437
        %v440 = vunpack.c.l.s4 1983009808
        %v441 = vunpack.c.0.s8 %v440
        %v442 = vlaneseq
        %v443 = vshrl.u32 %v442, 7
        %v444 = vsub.s32 %v441, %v443
        %v445 = vrot.slane %v431, %v444
        %v446 = vcombine.low %v438, %v445
        %448 = vst [vmem:[%s236] sm:$0xff] %v446
        %s449 = sand.u32 %s102, 1
        %s450 = scalar_lea.sflag [#allocation4], %s449
        %s451 = sand.u32 %s102, 1
        %s452 = smul.addr %s451, 8
        %s453 = scalar_lea.vmem [#allocation8], %s452
        // Predicated region
        $region45: #{tpu_custom_call.1} parent=31 // pred_check
          %p454 = pneg %p112
        $region46: #{tpu_custom_call.1} parent=31 // pred_check_branch
          %456 = sbr.rel (%p454) target = $region48
        $region47: #{tpu_custom_call.1} parent=31 // pred_region
          %s458 = ssub.s32 128, 128
          %459 = vsyncadd %s450, %s458
          %s460 = smul.addr %s21, 4
          %s461 = smul.addr %s460, 32
          %s462 = scalar_lea.hbm %s3, %s461
          %s464 = sshll.u32 %s453, 4
          %s465 = int_to_ptr.vmem [resolvable:$true] %s464
          %467 = dma.vmem_to_hbm [thread:$0]  %s465, 128, %s462, %s450
        $region48: #{tpu_custom_call.1} parent=31 // pred_fallthru
          _
      $region32: #{tpu_custom_call.1} parent=5 // pred_fallthru
        _
      %p468 = scmp.le.s32.totalorder 2, %s16
      // Predicated region
      $region49: #{tpu_custom_call.1} parent=5 // pred_check
        %p469 = pneg %p468
      $region50: #{tpu_custom_call.1} parent=5 // pred_check_branch
        %471 = sbr.rel (%p469) target = $region52
      $region51: #{tpu_custom_call.1} parent=5 // pred_region
        %s472 = ssub.s32 %s16, 2
        // Predicated region
        $region53: #{tpu_custom_call.1} parent=51 // pred_check
          %p473 = pneg %p118
        $region54: #{tpu_custom_call.1} parent=51 // pred_check_branch
          %475 = sbr.rel (%p473) target = $region56
        $region55: #{tpu_custom_call.1} parent=51 // pred_region
          %s476 = sand.u32 %s103, 1
          %s477 = scalar_lea.sflag [#allocation4], %s476
          %s478 = sand.u32 %s103, 1
          %s479 = smul.addr %s478, 8
          %s480 = scalar_lea.vmem [#allocation8], %s479
          %481 = dma.done %s477, 128
        $region56: #{tpu_custom_call.1} parent=51 // pred_fallthru
          _
      $region52: #{tpu_custom_call.1} parent=5 // pred_fallthru
        _
    $region6: #{tpu_custom_call.1} parent=1 // loop_footer
      %s20 = sadd.s32 1, %s16
    $region7: #{tpu_custom_call.1} parent=1 // loop_footer_branch
      %15 = sbr.rel target = $region3
    $region8: #{tpu_custom_call.1} parent=1 // loop_exit
      _
    %482 = vsyncpa [#allocation3], 1
    %s483 = scalar_lea.sflag [#allocation3], 1
    %484 = vsyncpa %s483, 1
    %485 = vsyncpa [#allocation6], 1
    %s486 = scalar_lea.sflag [#allocation6], 1
    %487 = vsyncpa %s486, 1
    %488 = vsyncpa [#allocation4], 1
    %s489 = scalar_lea.sflag [#allocation4], 1
    %490 = vsyncpa %s489, 1

</llo_original>
